<compile_context>
chip_gen: v7x
topology: tpu7x:2x2x1
jax: 0.10.0
libtpu: 0.0.40
codegen_flags: <defaults>
</compile_context>

<pallas_src>
import functools

import jax
import jax.numpy as jnp
from jax.experimental import pallas as pl
from jax.experimental.pallas import tpu as pltpu


def _cdiv(a, b):
    return -(-a // b)


def _round_up(n, m):
    return ((n + m - 1) // m) * m


def mlp_kernel(x_ref, w1_ref, b1_ref, w2_ref, b2_ref, w3_ref, b3_ref, o_ref):
    # Cast x to the MXU compute dtype in-kernel (VALU has slack here; avoids a separate
    # XLA cast pass over x in HBM).
    x = x_ref[...].astype(w1_ref.dtype)
    # fc1 + ReLU: MXU matmul (bf16 or f32 operands), f32 accumulation, f32 epilogue.
    h1 = jnp.dot(x, w1_ref[...], preferred_element_type=jnp.float32)
    h1 = jnp.maximum(h1 + b1_ref[...], 0.0)
    # fc2 + ReLU.
    h2 = jnp.dot(h1.astype(w2_ref.dtype), w2_ref[...],
                 preferred_element_type=jnp.float32)
    h2 = jnp.maximum(h2 + b2_ref[...], 0.0)
    # fc3 (out_features = 1), computed directly in the transposed, lane-dense layout:
    # (1, 32) contracted with (TB, 32) on the 32-dim -> (1, TB). Head stays in f32.
    h3 = jax.lax.dot_general(
        w3_ref[...], h2,
        dimension_numbers=(((1,), (1,)), ((), ())),
        preferred_element_type=jnp.float32)
    o_ref[...] = (h3 + b3_ref[...]).astype(o_ref.dtype)


@functools.partial(jax.jit, static_argnames=("block_rows", "compute_dtype"))
def regression_model3_forward(x, params, *, block_rows=4096,
                              compute_dtype=jnp.bfloat16):
    """x: (B, 61) float32. params: dict of (in, out)-layout weights / (1, out) biases.

    compute_dtype: dtype of the MXU operands for fc1/fc2 (x, w1, w2). Accumulation,
    the bias/ReLU epilogue and the fc3 head are always f32.
    """
    B, F = x.shape
    assert F == 61, F

    w1 = params["w1"].astype(compute_dtype)           # (61, 128)
    w2 = params["w2"].astype(compute_dtype)           # (128, 32)
    b1 = params["b1"].astype(jnp.float32)              # (1, 128)
    b2 = params["b2"].astype(jnp.float32)              # (1, 32)
    w3 = params["w3"].astype(jnp.float32)              # (1, 32)  (torch fc3.weight layout)
    b3 = params["b3"].astype(jnp.float32)              # (1, 1)

    # ---------------- batch tile selection ----------------
    x_in = x
    if B < 128:
        # Tiny batch: single tile; pad only to a sublane multiple if needed.
        tb = _round_up(B, 8)
        if tb != B:
            x_in = jnp.pad(x, ((0, tb - B), (0, 0)))
    else:
        # TB: multiple of 128, <= B (so only the last tile can be partial), balanced
        # across tiles, >= 2 tiles once B >= 256 (v7x megacore), capped by block_rows.
        b_units = _cdiv(B, 128)
        max_units = max(1, block_rows // 128)
        num_tiles = _cdiv(b_units, max_units)
        if B >= 256:
            num_tiles = max(num_tiles, 2)
        tb_units = min(_cdiv(b_units, num_tiles), B // 128)
        tb = tb_units * 128
    grid = _cdiv(B, tb)
    n_out = grid * tb

    flops = 2 * B * (61 * 128 + 128 * 32 + 32)
    bytes_accessed = (B * (61 * x.dtype.itemsize + 4)
                      + 4 * (61 * 128 + 128 + 128 * 32 + 32 + 32 + 1))

    out = pl.pallas_call(
        mlp_kernel,
        out_shape=jax.ShapeDtypeStruct((1, n_out), jnp.float32),
        grid=(grid,),
        in_specs=[
            pl.BlockSpec((tb, 61), lambda i: (i, 0)),    # x: streamed batch tiles
            pl.BlockSpec((61, 128), lambda i: (0, 0)),   # w1: resident
            pl.BlockSpec((1, 128), lambda i: (0, 0)),    # b1: resident
            pl.BlockSpec((128, 32), lambda i: (0, 0)),   # w2: resident
            pl.BlockSpec((1, 32), lambda i: (0, 0)),     # b2: resident
            pl.BlockSpec((1, 32), lambda i: (0, 0)),     # w3 row: resident
            pl.BlockSpec((1, 1), lambda i: (0, 0)),      # b3: resident
        ],
        out_specs=pl.BlockSpec((1, tb), lambda i: (0, i)),   # lane-dense output slab
        compiler_params=pltpu.CompilerParams(
            dimension_semantics=("parallel",),               # megacore split on v7x
            vmem_limit_bytes=48 * 1024 * 1024),
        cost_estimate=pl.CostEstimate(flops=flops, transcendentals=0,
                                      bytes_accessed=bytes_accessed),
    )(x_in, w1, b1, w2, b2, w3, b3)

    return out[0, :B].reshape(B, 1)


def init_params(key):
    """Deterministic synthetic parameters matching nn.Linear init / shapes.

    PyTorch stores Linear weight as (out, in); fc1/fc2 are kept transposed (in, out)
    so the kernel does x @ W + b. fc3's weight stays in its native (1, 32) layout.
    """
    k1, k2, k3, k4, k5, k6 = jax.random.split(key, 6)

    def u(k, shape, fan_in):
        bound = 1.0 / (fan_in ** 0.5)
        return jax.random.uniform(k, shape, jnp.float32, -bound, bound)

    return {
        "w1": u(k1, (61, 128), 61),
        "b1": u(k2, (1, 128), 61),
        "w2": u(k3, (128, 32), 128),
        "b2": u(k4, (1, 32), 128),
        "w3": u(k5, (1, 32), 32),
        "b3": u(k6, (1, 1), 32),
    }


def reference_forward(x, p, compute_dtype=jnp.float32):
    """Pure-JAX reference applying the same operand casts as the kernel."""
    hp = jax.lax.Precision.HIGHEST
    h1 = jnp.dot(x.astype(compute_dtype), p["w1"].astype(compute_dtype),
                 preferred_element_type=jnp.float32, precision=hp) + p["b1"]
    h1 = jnp.maximum(h1, 0.0)
    h2 = jnp.dot(h1.astype(compute_dtype), p["w2"].astype(compute_dtype),
                 preferred_element_type=jnp.float32, precision=hp) + p["b2"]
    h2 = jnp.maximum(h2, 0.0)
    return jnp.dot(h2, p["w3"].T, preferred_element_type=jnp.float32,
                   precision=hp) + p["b3"]


if __name__ == "__main__":
    key = jax.random.PRNGKey(0)
    kx, kp = jax.random.split(key)
    params = init_params(kp)

    # Small batch (single tile). Production path: bf16 MXU operands, f32 accumulation.
    B = 8
    x = jax.random.normal(kx, (B, 61), dtype=jnp.float32)
    out = jax.block_until_ready(regression_model3_forward(x, params))
    assert out.shape == (B, 1), out.shape
    ref_bf16 = reference_forward(x, params, compute_dtype=jnp.bfloat16)
    assert jnp.allclose(out, ref_bf16, atol=5e-3, rtol=5e-3), "bf16-path mismatch"

    # Strict f32 parity with the PyTorch module's forward.
    out_f32 = jax.block_until_ready(
        regression_model3_forward(x, params, compute_dtype=jnp.float32))
    ref_f32 = reference_forward(x, params, compute_dtype=jnp.float32)
    assert jnp.allclose(out_f32, ref_f32, atol=1e-4, rtol=1e-4), "f32-path mismatch"

    # Ragged tiny batch (exercises the B<128, pad-to-multiple-of-8 path).
    B2 = 13
    x2 = jax.random.normal(jax.random.PRNGKey(1), (B2, 61), dtype=jnp.float32)
    out2 = jax.block_until_ready(
        regression_model3_forward(x2, params, compute_dtype=jnp.float32))
    assert out2.shape == (B2, 1), out2.shape
    assert jnp.allclose(out2, reference_forward(x2, params),
                        atol=1e-4, rtol=1e-4), "ragged-tiny-batch mismatch"

    # Multi-tile batch with a partial last tile (grid > 1, lane-dense slab + slice).
    B3 = 300
    x3 = jax.random.normal(jax.random.PRNGKey(2), (B3, 61), dtype=jnp.float32)
    out3 = jax.block_until_ready(
        regression_model3_forward(x3, params, compute_dtype=jnp.float32))
    assert out3.shape == (B3, 1), out3.shape
    assert jnp.allclose(out3, reference_forward(x3, params),
                        atol=1e-4, rtol=1e-4), "multi-tile mismatch"

    print("KERNEL_OK")
</pallas_src>

<mosaic_0001>
module attributes {stable_mosaic.version = 11 : i64} {
  func.func @mlp_kernel(%arg0: i32, %arg1: memref<8x61xf32, #tpu.memory_space<vmem>>, %arg2: memref<61x128xbf16, #tpu.memory_space<vmem>>, %arg3: memref<1x128xf32, #tpu.memory_space<vmem>>, %arg4: memref<128x32xbf16, #tpu.memory_space<vmem>>, %arg5: memref<1x32xf32, #tpu.memory_space<vmem>>, %arg6: memref<1x32xf32, #tpu.memory_space<vmem>>, %arg7: memref<1x1xf32, #tpu.memory_space<vmem>>, %arg8: memref<1x8xf32, #tpu.memory_space<vmem>>) attributes {dimension_semantics = [#tpu.dimension_semantics<parallel>], iteration_bounds = array<i64: 1>, scalar_prefetch = 0 : i64, scratch_operands = 0 : i64, tpu.core_type = #tpu.core_type<tc>, window_params = [{transform_indices = @transform_0, window_bounds = array<i64: 8, 61>}, {pipeline_mode = #tpu.pipeline_mode<synchronous>, transform_indices = @transform_1, window_bounds = array<i64: 61, 128>}, {pipeline_mode = #tpu.pipeline_mode<synchronous>, transform_indices = @transform_2, window_bounds = array<i64: 1, 128>}, {pipeline_mode = #tpu.pipeline_mode<synchronous>, transform_indices = @transform_3, window_bounds = array<i64: 128, 32>}, {pipeline_mode = #tpu.pipeline_mode<synchronous>, transform_indices = @transform_4, window_bounds = array<i64: 1, 32>}, {pipeline_mode = #tpu.pipeline_mode<synchronous>, transform_indices = @transform_5, window_bounds = array<i64: 1, 32>}, {pipeline_mode = #tpu.pipeline_mode<synchronous>, transform_indices = @transform_6, window_bounds = array<i64: 1, 1>}, {transform_indices = @transform_7, window_bounds = array<i64: 1, 8>}]} {
    %c0 = arith.constant 0 : index
    %c0_0 = arith.constant 0 : index
    %0 = vector.load %arg1[%c0, %c0_0] : memref<8x61xf32, #tpu.memory_space<vmem>>, vector<8x61xf32>
    %1 = arith.truncf %0 : vector<8x61xf32> to vector<8x61xbf16>
    %c0_1 = arith.constant 0 : index
    %c0_2 = arith.constant 0 : index
    %2 = vector.load %arg2[%c0_1, %c0_2] : memref<61x128xbf16, #tpu.memory_space<vmem>>, vector<61x128xbf16>
    %cst = arith.constant dense<0.000000e+00> : vector<8x128xf32>
    %3 = tpu.matmul %1, %2, %cst {dimension_numbers = #tpu.dot_dimension_numbers<[1], [0], [0], [1], [0, 0, 1, 1], [], []>} : vector<8x61xbf16>, vector<61x128xbf16>, vector<8x128xf32> -> vector<8x128xf32>
    %c0_3 = arith.constant 0 : index
    %c0_4 = arith.constant 0 : index
    %4 = vector.load %arg3[%c0_3, %c0_4] : memref<1x128xf32, #tpu.memory_space<vmem>>, vector<1x128xf32>
    %5 = vector.broadcast %4 : vector<1x128xf32> to vector<8x128xf32>
    %6 = arith.addf %3, %5 : vector<8x128xf32>
    %cst_5 = arith.constant 0.000000e+00 : f32
    %7 = vector.broadcast %cst_5 : f32 to vector<8x128xf32>
    %8 = arith.maximumf %6, %7 : vector<8x128xf32>
    %9 = arith.truncf %8 : vector<8x128xf32> to vector<8x128xbf16>
    %c0_6 = arith.constant 0 : index
    %c0_7 = arith.constant 0 : index
    %10 = vector.load %arg4[%c0_6, %c0_7] : memref<128x32xbf16, #tpu.memory_space<vmem>>, vector<128x32xbf16>
    %cst_8 = arith.constant dense<0.000000e+00> : vector<8x32xf32>
    %11 = tpu.matmul %9, %10, %cst_8 {dimension_numbers = #tpu.dot_dimension_numbers<[1], [0], [0], [1], [0, 0, 1, 1], [], []>} : vector<8x128xbf16>, vector<128x32xbf16>, vector<8x32xf32> -> vector<8x32xf32>
    %c0_9 = arith.constant 0 : index
    %c0_10 = arith.constant 0 : index
    %12 = vector.load %arg5[%c0_9, %c0_10] : memref<1x32xf32, #tpu.memory_space<vmem>>, vector<1x32xf32>
    %13 = vector.broadcast %12 : vector<1x32xf32> to vector<8x32xf32>
    %14 = arith.addf %11, %13 : vector<8x32xf32>
    %cst_11 = arith.constant 0.000000e+00 : f32
    %15 = vector.broadcast %cst_11 : f32 to vector<8x32xf32>
    %16 = arith.maximumf %14, %15 : vector<8x32xf32>
    %c0_12 = arith.constant 0 : index
    %c0_13 = arith.constant 0 : index
    %17 = vector.load %arg6[%c0_12, %c0_13] : memref<1x32xf32, #tpu.memory_space<vmem>>, vector<1x32xf32>
    %cst_14 = arith.constant dense<0.000000e+00> : vector<1x8xf32>
    %18 = tpu.matmul %17, %16, %cst_14 {dimension_numbers = #tpu.dot_dimension_numbers<[1], [1], [0], [0], [0, 0, 1, 0], [], []>} : vector<1x32xf32>, vector<8x32xf32>, vector<1x8xf32> -> vector<1x8xf32>
    %c0_15 = arith.constant 0 : index
    %c0_16 = arith.constant 0 : index
    %19 = vector.load %arg7[%c0_15, %c0_16] : memref<1x1xf32, #tpu.memory_space<vmem>>, vector<1x1xf32>
    %20 = vector.broadcast %19 : vector<1x1xf32> to vector<1x8xf32>
    %21 = arith.addf %18, %20 : vector<1x8xf32>
    %c0_17 = arith.constant 0 : index
    %c0_18 = arith.constant 0 : index
    %22 = vector.load %arg8[%c0_17, %c0_18] : memref<1x8xf32, #tpu.memory_space<vmem>>, vector<1x8xf32>
    tpu.vector_store %arg8[%c0_17, %c0_18], %21 {strides = array<i32>} : memref<1x8xf32, #tpu.memory_space<vmem>>, vector<1x8xf32>,
    return
  }
  func.func @transform_0(%arg0: i32) -> (i32, i32) {
    %c0_i32 = arith.constant 0 : i32
    %c0_i32_0 = arith.constant 0 : i32
    return %arg0, %c0_i32 : i32, i32
  }
  func.func @transform_1(%arg0: i32) -> (i32, i32) {
    %c0_i32 = arith.constant 0 : i32
    %c0_i32_0 = arith.constant 0 : i32
    %c0_i32_1 = arith.constant 0 : i32
    return %c0_i32, %c0_i32_0 : i32, i32
  }
  func.func @transform_2(%arg0: i32) -> (i32, i32) {
    %c0_i32 = arith.constant 0 : i32
    %c0_i32_0 = arith.constant 0 : i32
    %c0_i32_1 = arith.constant 0 : i32
    return %c0_i32, %c0_i32_0 : i32, i32
  }
  func.func @transform_3(%arg0: i32) -> (i32, i32) {
    %c0_i32 = arith.constant 0 : i32
    %c0_i32_0 = arith.constant 0 : i32
    %c0_i32_1 = arith.constant 0 : i32
    return %c0_i32, %c0_i32_0 : i32, i32
  }
  func.func @transform_4(%arg0: i32) -> (i32, i32) {
    %c0_i32 = arith.constant 0 : i32
    %c0_i32_0 = arith.constant 0 : i32
    %c0_i32_1 = arith.constant 0 : i32
    return %c0_i32, %c0_i32_0 : i32, i32
  }
  func.func @transform_5(%arg0: i32) -> (i32, i32) {
    %c0_i32 = arith.constant 0 : i32
    %c0_i32_0 = arith.constant 0 : i32
    %c0_i32_1 = arith.constant 0 : i32
    return %c0_i32, %c0_i32_0 : i32, i32
  }
  func.func @transform_6(%arg0: i32) -> (i32, i32) {
    %c0_i32 = arith.constant 0 : i32
    %c0_i32_0 = arith.constant 0 : i32
    %c0_i32_1 = arith.constant 0 : i32
    return %c0_i32, %c0_i32_0 : i32, i32
  }
  func.func @transform_7(%arg0: i32) -> (i32, i32) {
    %c0_i32 = arith.constant 0 : i32
    %c0_i32_0 = arith.constant 0 : i32
    return %c0_i32, %arg0 : i32, i32
  }
}

</mosaic_0001>

<llo_original>
// kernel: regression_model3_forward.1
$region0: #{regression_model3_forward.1}
  #allocation0 [shape = 'u32[]', space=smem, size = 0x4, offset = 0x4, fixed_abs, tag = 'smem constant byte address 0x4 - core index']
  #allocation1 [shape = 'u32[144,128]{1,0:T(1,128)}', space=vmem, size = 0x12000, scoped, tag = 'internal scratch']
  #allocation2 [shape = 'f32[1,1]{1,0:T(1,128)S(1)}', space=vmem, size = 0x200, scoped, tag = 'scoped memory for regression_model3_forward.1']
  %s0 = inlined_call_operand.vmem [shape: f32[8,61], index: 0, kind: input, shape index: {}]
  %s1 = inlined_call_operand.vmem [shape: bf16[61,128], index: 1, kind: input, shape index: {}]
  %s2 = inlined_call_operand.vmem [shape: f32[1,128], index: 2, kind: input, shape index: {}]
  %s3 = inlined_call_operand.vmem [shape: bf16[128,32], index: 3, kind: input, shape index: {}]
  %s4 = inlined_call_operand.vmem [shape: f32[1,32], index: 4, kind: input, shape index: {}]
  %s5 = inlined_call_operand.vmem [shape: f32[1,32], index: 5, kind: input, shape index: {}]
  %s6 = inlined_call_operand.<no memory space> [shape: f32[1,1], index: 6, kind: input, shape index: {}]
  %s7 = inlined_call_operand.hbm [shape: f32[1,8], index: 7, kind: output, shape index: {}]
  %s8 = sld [smem:[#allocation0]]
  $region38: #{regression_model3_forward.1} parent=0
    _
  %s10 = ssub.s32 1, %s8
  %s11 = scalar_select 0, %s10, %s8
  %v12 = vstv %s6
  %13 = vst [vmem:[#allocation2] sm:$0x1] %v12
  $region1: #{regression_model3_forward.1} parent=0
    #allocation3 [shape = 'u8[512]{0}', space=vmem, size = 0x400, scoped, tag = 'output window, operand 0, single buffered']
    #allocation4 [shape = 's32[1]{0}', space=sflag, size = 0x4, scoped, tag = 'scoped memory for regression_model3_forward.1']
    %14 = vsyncpa [#allocation4], 0
    // Predicated region
    $region2: #{regression_model3_forward.1} parent=1 // pred_check
      _
    $region3: #{regression_model3_forward.1} parent=1 // pred_check_branch
      %16 = sbr.rel (0) target = $region5
    $region4: #{regression_model3_forward.1} parent=1 // pred_region
      _
    $region5: #{regression_model3_forward.1} parent=1 // pred_fallthru
      _
    // Predicated region
    $region6: #{regression_model3_forward.1} parent=1 // pred_check
      _
    $region7: #{regression_model3_forward.1} parent=1 // pred_check_branch
      %18 = sbr.rel (0) target = $region9
    $region8: #{regression_model3_forward.1} parent=1 // pred_region
      _
    $region9: #{regression_model3_forward.1} parent=1 // pred_fallthru
      _
    // Predicated region
    $region10: #{regression_model3_forward.1} parent=1 // pred_check
      _
    $region11: #{regression_model3_forward.1} parent=1 // pred_check_branch
      %20 = sbr.rel (0) target = $region13
    $region12: #{regression_model3_forward.1} parent=1 // pred_region
      _
    $region13: #{regression_model3_forward.1} parent=1 // pred_fallthru
      _
    // Predicated region
    $region14: #{regression_model3_forward.1} parent=1 // pred_check
      _
    $region15: #{regression_model3_forward.1} parent=1 // pred_check_branch
      %22 = sbr.rel (0) target = $region17
    $region16: #{regression_model3_forward.1} parent=1 // pred_region
      _
    $region17: #{regression_model3_forward.1} parent=1 // pred_fallthru
      _
    // Predicated region
    $region18: #{regression_model3_forward.1} parent=1 // pred_check
      _
    $region19: #{regression_model3_forward.1} parent=1 // pred_check_branch
      %24 = sbr.rel (0) target = $region21
    $region20: #{regression_model3_forward.1} parent=1 // pred_region
      _
    $region21: #{regression_model3_forward.1} parent=1 // pred_fallthru
      _
    // Predicated region
    $region22: #{regression_model3_forward.1} parent=1 // pred_check
      _
    $region23: #{regression_model3_forward.1} parent=1 // pred_check_branch
      %26 = sbr.rel (0) target = $region25
    $region24: #{regression_model3_forward.1} parent=1 // pred_region
      _
    $region25: #{regression_model3_forward.1} parent=1 // pred_fallthru
      _
    // Predicated region
    $region26: #{regression_model3_forward.1} parent=1 // pred_check
      _
    $region27: #{regression_model3_forward.1} parent=1 // pred_check_branch
      %28 = sbr.rel (0) target = $region29
    $region28: #{regression_model3_forward.1} parent=1 // pred_region
      _
    $region29: #{regression_model3_forward.1} parent=1 // pred_fallthru
      _
    %v30 = vld [vmem:[%s0] sm:$0xff]
    %v31 = vpack.c.bf16 %v30, %v30
    %v32 = vld [vmem:[%s1] sm:$0xf]
    %v33 = vld [vmem:[%s1 + $0x4] sm:$0xf]
    %v34 = vld [vmem:[%s1 + $0x8] sm:$0xf]
    %v35 = vld [vmem:[%s1 + $0xc] sm:$0xf]
    %v36 = vld [vmem:[%s1 + $0x10] sm:$0xf]
    %v37 = vld [vmem:[%s1 + $0x14] sm:$0xf]
    %v38 = vld [vmem:[%s1 + $0x18] sm:$0xf]
    %v39 = vld [vmem:[%s1 + $0x1c] sm:$0x7]
    %v40 = vld [vmem:[%s2] sm:$0x1]
    %v42 = vlaneseq
    %v43 = vshrl.u32 %v42, 7
    %v44 = vsub.s32 0, %v43
    %v45 = vrot.slane %v40, %v44
    %v55 = vunpack.c.l.b16 %v32
    %v56 = vunpack.c.l.b16 %v33
    %v57 = vunpack.c.l.b16 %v34
    %v58 = vunpack.c.l.b16 %v35
    %v59 = vunpack.c.l.b16 %v36
    %v60 = vunpack.c.l.b16 %v37
    %v61 = vunpack.c.l.b16 %v38
    %v62 = vunpack.c.l.b16 %v39
    %v63 = vpack.c.b16 %v56, %v55
    %v64 = vpack.c.b16 %v58, %v57
    %v65 = vpack.c.b16 %v60, %v59
    %v66 = vpack.c.b16 %v62, %v61
    %vm70 = vcmask 498688
    %v72 = vsel %vm70, %v31, 0
    %vm74 = vcmask 1045504
    %vm75 = vcmask 1046528
    %v76 = vsel %vm74, 4294967295, 65535
    %v77 = vsel %vm75, %v76, 0
    %v79 = vand.u32 %v66, %v77
    %81 = vmatprep.subr.bf16.mxu0 0
    %82 = vmatpush1.bf16.msra.mxu0 %v63
    %83 = vmatprep.subr.bf16.mxu0 0
    %84 = vmatpush1.bf16.msra.mxu0 %v64
    %85 = vmatprep.subr.bf16.mxu0 0
    %86 = vmatpush1.bf16.msra.mxu0 %v65
    %87 = vmatprep.subr.bf16.mxu0 0
    %88 = vmatpush1.bf16.msra.mxu0 %v79
    %89 = vmatprep.subr.bf16.mxu0 0
    %90 = vmatpush1.bf16.msra.mxu0 0
    %91 = vmatprep.subr.bf16.mxu0 0
    %92 = vmatpush1.bf16.msra.mxu0 0
    %93 = vmatprep.subr.bf16.mxu0 0
    %94 = vmatpush1.bf16.msra.mxu0 0
    %95 = vmatprep.subr.bf16.mxu0 0
    %96 = vmatpush1.bf16.msra.mxu0 0
    %97 = vmatprep.subr.bf16.mxu0 0
    %98 = vmatpush1.bf16.msra.mxu0 0
    %99 = vmatprep.subr.bf16.mxu0 0
    %100 = vmatpush1.bf16.msra.mxu0 0
    %101 = vmatprep.subr.bf16.mxu0 0
    %102 = vmatpush1.bf16.msra.mxu0 0
    %103 = vmatprep.subr.bf16.mxu0 0
    %104 = vmatpush1.bf16.msra.mxu0 0
    %105 = vmatprep.subr.bf16.mxu0 0
    %106 = vmatpush1.bf16.msra.mxu0 0
    %107 = vmatprep.subr.bf16.mxu0 0
    %108 = vmatpush1.bf16.msra.mxu0 0
    %109 = vmatprep.subr.bf16.mxu0 0
    %110 = vmatpush1.bf16.msra.mxu0 0
    %111 = vmatprep.subr.bf16.mxu0 0
    %112 = vmatpush1.bf16.msra.mxu0 0
    %113 = vmatprep.mubr.bf16.mxu0 0
    %114 = vmatmul.mubr.bf16.gmra.mrb[0].mxu0 %v72
    %v115 = vpop.f32.mrb[0].mxu0
    %v116 = vadd.f32 %v45, %v115
    %v117 = vpop.f32.mrb[0].mxu0
    %v118 = vpop.f32.mrb[0].mxu0
    %v119 = vpop.f32.mrb[0].mxu0
    %120 = vdwg.mxu0
    %v121 = vmax.f32 %v116, 0.0
    %v122 = vpack.c.bf16 %v121, %v121
    %v123 = vld [vmem:[%s3] sm:$0xf]
    %v124 = vld [vmem:[%s3 + $0x4] sm:$0xf]
    %v125 = vld [vmem:[%s3 + $0x8] sm:$0xf]
    %v126 = vld [vmem:[%s3 + $0xc] sm:$0xf]
    %v127 = vld [vmem:[%s3 + $0x10] sm:$0xf]
    %v128 = vld [vmem:[%s3 + $0x14] sm:$0xf]
    %v129 = vld [vmem:[%s3 + $0x18] sm:$0xf]
    %v130 = vld [vmem:[%s3 + $0x1c] sm:$0xf]
    %v131 = vld [vmem:[%s3 + $0x20] sm:$0xf]
    %v132 = vld [vmem:[%s3 + $0x24] sm:$0xf]
    %v133 = vld [vmem:[%s3 + $0x28] sm:$0xf]
    %v134 = vld [vmem:[%s3 + $0x2c] sm:$0xf]
    %v135 = vld [vmem:[%s3 + $0x30] sm:$0xf]
    %v136 = vld [vmem:[%s3 + $0x34] sm:$0xf]
    %v137 = vld [vmem:[%s3 + $0x38] sm:$0xf]
    %v138 = vld [vmem:[%s3 + $0x3c] sm:$0xf]
    %v139 = vld [vmem:[%s4] sm:$0x1]
    %v141 = vlaneseq
    %v142 = vshrl.u32 %v141, 7
    %v143 = vsub.s32 0, %v142
    %v144 = vrot.slane %v139, %v143
    %v162 = vunpack.c.l.b16 %v123
    %v163 = vunpack.c.l.b16 %v124
    %v164 = vunpack.c.l.b16 %v125
    %v165 = vunpack.c.l.b16 %v126
    %v166 = vunpack.c.l.b16 %v127
    %v167 = vunpack.c.l.b16 %v128
    %v168 = vunpack.c.l.b16 %v129
    %v169 = vunpack.c.l.b16 %v130
    %v170 = vunpack.c.l.b16 %v131
    %v171 = vunpack.c.l.b16 %v132
    %v172 = vunpack.c.l.b16 %v133
    %v173 = vunpack.c.l.b16 %v134
    %v174 = vunpack.c.l.b16 %v135
    %v175 = vunpack.c.l.b16 %v136
    %v176 = vunpack.c.l.b16 %v137
    %v177 = vunpack.c.l.b16 %v138
    %v178 = vpack.c.b16 %v163, %v162
    %v179 = vpack.c.b16 %v165, %v164
    %v180 = vpack.c.b16 %v167, %v166
    %v181 = vpack.c.b16 %v169, %v168
    %v182 = vpack.c.b16 %v171, %v170
    %v183 = vpack.c.b16 %v173, %v172
    %v184 = vpack.c.b16 %v175, %v174
    %v185 = vpack.c.b16 %v177, %v176
    %194 = vmatprep.subr.bf16.mxu0 0
    %195 = vmatpush1.bf16.msra.mxu0 %v178
    %196 = vmatprep.subr.bf16.mxu0 0
    %197 = vmatpush1.bf16.msra.mxu0 %v179
    %198 = vmatprep.subr.bf16.mxu0 0
    %199 = vmatpush1.bf16.msra.mxu0 %v180
    %200 = vmatprep.subr.bf16.mxu0 0
    %201 = vmatpush1.bf16.msra.mxu0 %v181
    %202 = vmatprep.subr.bf16.mxu0 0
    %203 = vmatpush1.bf16.msra.mxu0 %v182
    %204 = vmatprep.subr.bf16.mxu0 0
    %205 = vmatpush1.bf16.msra.mxu0 %v183
    %206 = vmatprep.subr.bf16.mxu0 0
    %207 = vmatpush1.bf16.msra.mxu0 %v184
    %208 = vmatprep.subr.bf16.mxu0 0
    %209 = vmatpush1.bf16.msra.mxu0 %v185
    %210 = vmatprep.subr.bf16.mxu0 0
    %211 = vmatpush1.bf16.msra.mxu0 0
    %212 = vmatprep.subr.bf16.mxu0 0
    %213 = vmatpush1.bf16.msra.mxu0 0
    %214 = vmatprep.subr.bf16.mxu0 0
    %215 = vmatpush1.bf16.msra.mxu0 0
    %216 = vmatprep.subr.bf16.mxu0 0
    %217 = vmatpush1.bf16.msra.mxu0 0
    %218 = vmatprep.subr.bf16.mxu0 0
    %219 = vmatpush1.bf16.msra.mxu0 0
    %220 = vmatprep.subr.bf16.mxu0 0
    %221 = vmatpush1.bf16.msra.mxu0 0
    %222 = vmatprep.subr.bf16.mxu0 0
    %223 = vmatpush1.bf16.msra.mxu0 0
    %224 = vmatprep.subr.bf16.mxu0 0
    %225 = vmatpush1.bf16.msra.mxu0 0
    %226 = vmatprep.mubr.bf16.mxu0 0
    %227 = vmatmul.mubr.bf16.gmra.mrb[0].mxu0 %v122
    %v228 = vpop.f32.mrb[0].mxu0
    %v229 = vadd.f32 %v144, %v228
    %v230 = vpop.f32.mrb[0].mxu0
    %v231 = vpop.f32.mrb[0].mxu0
    %v232 = vpop.f32.mrb[0].mxu0
    %233 = vdwg.mxu0
    %v234 = vmax.f32 %v229, 0.0
    %v235 = vld [vmem:[%s5] sm:$0x1]
    %v236 = vld [vmem:[#allocation2] sm:$0x1]
    %238 = vset.pattern.permute.xlu0 0
    %239 = vperm.xlu0 %238, %v236
    %v240 = vpop.permute.xlu0 %239
    %v242 = vlaneseq
    %v243 = vshrl.u32 %v242, 7
    %v244 = vsub.s32 0, %v243
    %v245 = vrot.slane %v240, %v244
    %vm246 = vcmask 261120
    %v248 = vsel %vm246, %v235, 0
    %v251 = vsel %vm246, %v234, 0
    %253 = vmatprep.subr.mxu0 0.0
    %254 = vmatpush1.xpose.msra.mxu0 %v251
    %255 = vmatprep.subr.mxu0 0.0
    %256 = vmatpush1.xpose.msra.mxu0 0.0
    %257 = vmatprep.subr.mxu0 0.0
    %258 = vmatpush1.xpose.msra.mxu0 0.0
    %259 = vmatprep.subr.mxu0 0.0
    %260 = vmatpush1.xpose.msra.mxu0 0.0
    %261 = vmatprep.subr.mxu0 0.0
    %262 = vmatpush1.xpose.msra.mxu0 0.0
    %263 = vmatprep.subr.mxu0 0.0
    %264 = vmatpush1.xpose.msra.mxu0 0.0
    %265 = vmatprep.subr.mxu0 0.0
    %266 = vmatpush1.xpose.msra.mxu0 0.0
    %267 = vmatprep.subr.mxu0 0.0
    %268 = vmatpush1.xpose.msra.mxu0 0.0
    %269 = vmatprep.subr.mxu0 0.0
    %270 = vmatpush1.xpose.msra.mxu0 0.0
    %271 = vmatprep.subr.mxu0 0.0
    %272 = vmatpush1.xpose.msra.mxu0 0.0
    %273 = vmatprep.subr.mxu0 0.0
    %274 = vmatpush1.xpose.msra.mxu0 0.0
    %275 = vmatprep.subr.mxu0 0.0
    %276 = vmatpush1.xpose.msra.mxu0 0.0
    %277 = vmatprep.subr.mxu0 0.0
    %278 = vmatpush1.xpose.msra.mxu0 0.0
    %279 = vmatprep.subr.mxu0 0.0
    %280 = vmatpush1.xpose.msra.mxu0 0.0
    %281 = vmatprep.subr.mxu0 0.0
    %282 = vmatpush1.xpose.msra.mxu0 0.0
    %283 = vmatprep.subr.mxu0 0.0
    %284 = vmatpush1.xpose.msra.mxu0 0.0
    %285 = vmatprep.subr.mxu0 0.0
    %286 = vmatpush1.xpose.msra.mxu0 0.0
    %287 = vmatprep.subr.mxu0 0.0
    %288 = vmatpush1.xpose.msra.mxu0 0.0
    %289 = vmatprep.subr.mxu0 0.0
    %290 = vmatpush1.xpose.msra.mxu0 0.0
    %291 = vmatprep.subr.mxu0 0.0
    %292 = vmatpush1.xpose.msra.mxu0 0.0
    %293 = vmatprep.subr.mxu0 0.0
    %294 = vmatpush1.xpose.msra.mxu0 0.0
    %295 = vmatprep.subr.mxu0 0.0
    %296 = vmatpush1.xpose.msra.mxu0 0.0
    %297 = vmatprep.subr.mxu0 0.0
    %298 = vmatpush1.xpose.msra.mxu0 0.0
    %299 = vmatprep.subr.mxu0 0.0
    %300 = vmatpush1.xpose.msra.mxu0 0.0
    %301 = vmatprep.subr.mxu0 0.0
    %302 = vmatpush1.xpose.msra.mxu0 0.0
    %303 = vmatprep.subr.mxu0 0.0
    %304 = vmatpush1.xpose.msra.mxu0 0.0
    %305 = vmatprep.subr.mxu0 0.0
    %306 = vmatpush1.xpose.msra.mxu0 0.0
    %307 = vmatprep.subr.mxu0 0.0
    %308 = vmatpush1.xpose.msra.mxu0 0.0
    %309 = vmatprep.subr.mxu0 0.0
    %310 = vmatpush1.xpose.msra.mxu0 0.0
    %311 = vmatprep.subr.mxu0 0.0
    %312 = vmatpush1.xpose.msra.mxu0 0.0
    %313 = vmatprep.subr.mxu0 0.0
    %314 = vmatpush1.xpose.msra.mxu0 0.0
    %315 = vmatprep.subr.mxu0 0.0
    %316 = vmatpush1.xpose.msra.mxu0 0.0
    %317 = vmatprep.mubr.f32.mxu0 0.0
    %318 = vmatmul.mubr.f32.gmra.mrb[0].mxu0 %v248
    %v319 = vpop.f32.mrb[0].mxu0
    %v320 = vadd.f32 %v245, %v319
    %v321 = vpop.f32.mrb[0].mxu0
    %322 = vdwg.mxu0
    %vm323 = vcmask 57344
    %324 = vst.msk [vmem:[#allocation3] sm:$0x1] %vm323, %v320
    // Predicated region
    $region30: #{regression_model3_forward.1} parent=1 // pred_check
      _
    $region31: #{regression_model3_forward.1} parent=1 // pred_check_branch
      %326 = sbr.rel (0) target = $region33
    $region32: #{regression_model3_forward.1} parent=1 // pred_region
      %s328 = ssub.s32 16, 16
      %329 = vsyncadd [#allocation4], %s328
      %s331 = sshll.u32 [#allocation3], 4
      %s332 = int_to_ptr.vmem [resolvable:$true] %s331
      %334 = dma.vmem_to_hbm [thread:$0]  %s332, 16, %s7, [#allocation4]
    $region33: #{regression_model3_forward.1} parent=1 // pred_fallthru
      _
    // Predicated region
    $region34: #{regression_model3_forward.1} parent=1 // pred_check
      _
    $region35: #{regression_model3_forward.1} parent=1 // pred_check_branch
      %336 = sbr.rel (0) target = $region37
    $region36: #{regression_model3_forward.1} parent=1 // pred_region
      %337 = dma.done [#allocation4], 16
    $region37: #{regression_model3_forward.1} parent=1 // pred_fallthru
      _
    %338 = vsyncpa [#allocation4], 1

</llo_original>
